<compile_context>
chip_gen: v7x
topology: tpu7x:2x2x1
jax: 0.10.0
libtpu: 0.0.40
codegen_flags: <defaults>
</compile_context>

<pallas_src>
import jax
import jax.numpy as jnp
from jax.experimental import pallas as pl
from jax.experimental.pallas import tpu as pltpu


def _round_up(x, m):
    return ((x + m - 1) // m) * m


# ----------------------------- Pallas kernel ---------------------------------
def cascade_kernel(
    # batched VMEM inputs
    sf_ref, of_ref, ppf_ref, pvf_ref, idx_ref,
    # params (VMEM-resident, full blocks)
    w1_ref, b1_ref, w2_ref,            # object_predictor
    wv_ref, bv_ref,                    # predicate_vis_feat_emb
    wfv_ref, wfp_ref, bf_ref,          # predicate_feat_emb (split weight)
    wp_ref, so2p_ref,                  # predicate_predictor, scaled so2p (+zero row)
    # packed lane-dense output (TB, Dpad)
    out_ref,
):
    TB = sf_ref.shape[0]
    O = w2_ref.shape[1]
    P = wp_ref.shape[1]
    OO1 = so2p_ref.shape[0]            # O*O + 1 (sentinel zero row)
    Dpad = out_ref.shape[1]

    w1 = w1_ref[...]
    b1 = b1_ref[...]
    w2 = w2_ref[...]

    # ---- object predictor, applied to subject and object features ----
    def obj_pred(x):
        h = jnp.maximum(
            jnp.dot(x, w1, preferred_element_type=jnp.float32) + b1, 0.0)
        return jnp.dot(h, w2, preferred_element_type=jnp.float32)

    s_score = obj_pred(sf_ref[...])                                    # (TB, O)
    o_score = obj_pred(of_ref[...])                                    # (TB, O)

    # ---- predicate branch (split weights, no scratch assembly) ----
    pvf_emb = jnp.maximum(
        jnp.dot(pvf_ref[...], wv_ref[...], preferred_element_type=jnp.float32)
        + bv_ref[...],
        0.0,
    )
    pf_emb = jnp.maximum(
        jnp.dot(pvf_emb, wfv_ref[...], preferred_element_type=jnp.float32)
        + jnp.dot(ppf_ref[...], wfp_ref[...], preferred_element_type=jnp.float32)
        + bf_ref[...],
        0.0,
    )
    p_score = jnp.dot(pf_emb, wp_ref[...], preferred_element_type=jnp.float32)  # (TB, P)

    # ---- knowledge bias: vectorized one-hot select (sentinel row handles
    #      invalid / padded indices; so2p already scaled by exp(factor)) ----
    onehot = (idx_ref[...] ==
              jax.lax.broadcasted_iota(jnp.int32, (TB, OO1), 1)).astype(jnp.float32)
    so_bias = jnp.dot(onehot, so2p_ref[...], preferred_element_type=jnp.float32)
    p_biased = p_score + so_bias

    # ---- single lane-dense store: [s | o | p_biased | zero-pad] ----
    pieces = [s_score, o_score, p_biased]
    pad = Dpad - (2 * O + P)
    if pad > 0:
        pieces.append(jnp.zeros((TB, pad), jnp.float32))
    out_ref[...] = jnp.concatenate(pieces, axis=1)


# ------------------------------ wrapper ---------------------------------------
def cascade_forward(inp_sf, inp_of, inp_ppf, inp_pvf, gt_s, gt_o, params, *,
                    block_b=1024):
    B = inp_sf.shape[0]
    O = params["w2"].shape[1]          # object_num (includes background)
    P = params["wp"].shape[1]          # predicate_num
    OO = O * O
    Dtot = 2 * O + P
    Dpad = _round_up(Dtot, 128)        # lane-dense packed output width

    # ---- batch tile: multiple of 8, <= block_b; aim for >=2 grid steps on
    #      large batches so both v7x TensorCores get work ----
    TB = min(block_b, _round_up(B, 8))
    if B >= 16:
        TB = min(TB, max(8, _round_up(_round_up(B, 8) // 2, 8)))
    B_pad = _round_up(B, TB)

    def pad_rows(x):
        x = x.astype(jnp.float32)
        return x if B_pad == B else jnp.pad(x, ((0, B_pad - B), (0, 0)))

    sf, of, ppf, pvf = map(pad_rows, (inp_sf, inp_of, inp_ppf, inp_pvf))

    # ---- flat knowledge index; invalid / padded rows -> sentinel zero row ----
    gs = gt_s.reshape(-1).astype(jnp.int32)
    go = gt_o.reshape(-1).astype(jnp.int32)
    valid = (gs >= 0) & (gs < O) & (go >= 0) & (go < O)
    flat_idx = jnp.where(valid, gs * O + go, OO).reshape(-1, 1)
    if B_pad != B:
        flat_idx = jnp.pad(flat_idx, ((0, B_pad - B), (0, 0)), constant_values=OO)

    # ---- fold exp(so2p_factor) into the table once; append sentinel zero row ----
    scale = jnp.exp(params["so2p_factor"][0, 0])
    so2p_ext = jnp.concatenate(
        [params["so2p"].astype(jnp.float32) * scale,
         jnp.zeros((1, P), jnp.float32)], axis=0)                   # (OO+1, P)

    def row_spec(d):
        return pl.BlockSpec((TB, d), lambda i: (i, 0))

    def full_spec(a):
        return pl.BlockSpec(a.shape, lambda i, _nd=a.ndim: (0,) * _nd)

    packed = pl.pallas_call(
        cascade_kernel,
        out_shape=jax.ShapeDtypeStruct((B_pad, Dpad), jnp.float32),
        grid=(B_pad // TB,),
        in_specs=[
            row_spec(inp_sf.shape[1]), row_spec(inp_of.shape[1]),
            row_spec(inp_ppf.shape[1]), row_spec(inp_pvf.shape[1]),
            row_spec(1),
            full_spec(params["w1"]), full_spec(params["b1"]), full_spec(params["w2"]),
            full_spec(params["wv"]), full_spec(params["bv"]),
            full_spec(params["wfv"]), full_spec(params["wfp"]), full_spec(params["bf"]),
            full_spec(params["wp"]), full_spec(so2p_ext),
        ],
        out_specs=pl.BlockSpec((TB, Dpad), lambda i: (i, 0)),
        compiler_params=pltpu.CompilerParams(dimension_semantics=("parallel",)),
    )(sf, of, ppf, pvf, flat_idx,
      params["w1"], params["b1"], params["w2"],
      params["wv"], params["bv"],
      params["wfv"], params["wfp"], params["bf"],
      params["wp"], so2p_ext)

    s_score = packed[:B, :O]
    o_score = packed[:B, O:2 * O]
    p_biased = packed[:B, 2 * O:2 * O + P]
    return s_score, o_score, p_biased


# ------------------------- plain-JAX reference --------------------------------
def cascade_reference(inp_sf, inp_of, inp_ppf, inp_pvf, gt_s, gt_o, p):
    def obj_pred(x):
        h = jnp.maximum(x @ p["w1"] + p["b1"], 0.0)
        return h @ p["w2"]

    s_score = obj_pred(inp_sf)
    o_score = obj_pred(inp_of)
    pvf_emb = jnp.maximum(inp_pvf @ p["wv"] + p["bv"], 0.0)
    wf = jnp.concatenate([p["wfv"], p["wfp"]], axis=0)          # torch concat order
    pf_in = jnp.concatenate([pvf_emb, inp_ppf], axis=1)
    pf_emb = jnp.maximum(pf_in @ wf + p["bf"], 0.0)
    p_score = pf_emb @ p["wp"]

    O = p["w2"].shape[1]
    s_vec = jax.nn.one_hot(gt_s, O, dtype=jnp.float32)
    o_vec = jax.nn.one_hot(gt_o, O, dtype=jnp.float32)
    so = (s_vec[:, :, None] * o_vec[:, None, :]).reshape(gt_s.shape[0], O * O)
    so_bias = (so @ p["so2p"]) * jnp.exp(p["so2p_factor"][0, 0])
    return s_score, o_score, p_score + so_bias


# --------------------------------- main ---------------------------------------
if __name__ == "__main__":
    B = 8
    obj_feature_dim = 32
    pred_vis_feature_dim = 32
    pred_pos_feature_dim = 16
    hidden_dim = 32
    object_num_raw = 7          # param['object_num']
    O = object_num_raw + 1      # self.object_num
    P = 16                      # predicate_num

    key = jax.random.PRNGKey(0)
    ks = jax.random.split(key, 16)

    def rn(k, shape, scale=0.1):
        return (scale * jax.random.normal(k, shape)).astype(jnp.float32)

    params = {
        # object_predictor: Linear(obj_dim, hidden) + Linear(hidden, O, bias=False)
        "w1": rn(ks[0], (obj_feature_dim, hidden_dim)),
        "b1": rn(ks[1], (1, hidden_dim)),
        "w2": rn(ks[2], (hidden_dim, O)),
        # predicate_vis_feat_emb: Linear(pred_vis_dim, hidden)
        "wv": rn(ks[3], (pred_vis_feature_dim, hidden_dim)),
        "bv": rn(ks[4], (1, hidden_dim)),
        # predicate_feat_emb: Linear(hidden + pred_pos_dim, hidden), split weight
        "wfv": rn(ks[5], (hidden_dim, hidden_dim)),
        "wfp": rn(ks[6], (pred_pos_feature_dim, hidden_dim)),
        "bf": rn(ks[7], (1, hidden_dim)),
        # predicate_predictor: Linear(hidden, P, bias=False)
        "wp": rn(ks[8], (hidden_dim, P)),
        # knowledge bias (use_knowledge=True); non-zero for a meaningful test
        "so2p": rn(ks[9], (O * O, P)),
        "so2p_factor": jnp.full((1, 1), 0.3, dtype=jnp.float32),
    }

    inp_sf = rn(ks[10], (B, obj_feature_dim), 1.0)
    inp_of = rn(ks[11], (B, obj_feature_dim), 1.0)
    inp_ppf = rn(ks[12], (B, pred_pos_feature_dim), 1.0)
    inp_pvf = rn(ks[13], (B, pred_vis_feature_dim), 1.0)
    gt_s = jax.random.randint(ks[14], (B,), 0, O, dtype=jnp.int32)
    gt_o = jax.random.randint(ks[15], (B,), 0, O, dtype=jnp.int32)

    s_score, o_score, p_score_biased = cascade_forward(
        inp_sf, inp_of, inp_ppf, inp_pvf, gt_s, gt_o, params
    )
    jax.block_until_ready((s_score, o_score, p_score_biased))

    rs, ro, rp = cascade_reference(inp_sf, inp_of, inp_ppf, inp_pvf, gt_s, gt_o, params)
    assert jnp.allclose(s_score, rs, atol=2e-5, rtol=1e-5)
    assert jnp.allclose(o_score, ro, atol=2e-5, rtol=1e-5)
    assert jnp.allclose(p_score_biased, rp, atol=2e-5, rtol=1e-5)

    print("KERNEL_OK")
</pallas_src>

<mosaic_0001>
module attributes {stable_mosaic.version = 11 : i64} {
  func.func @cascade_kernel(%arg0: i32, %arg1: memref<8x32xf32, #tpu.memory_space<vmem>>, %arg2: memref<8x32xf32, #tpu.memory_space<vmem>>, %arg3: memref<8x16xf32, #tpu.memory_space<vmem>>, %arg4: memref<8x32xf32, #tpu.memory_space<vmem>>, %arg5: memref<8x1xi32, #tpu.memory_space<vmem>>, %arg6: memref<32x32xf32, #tpu.memory_space<vmem>>, %arg7: memref<1x32xf32, #tpu.memory_space<vmem>>, %arg8: memref<32x8xf32, #tpu.memory_space<vmem>>, %arg9: memref<32x32xf32, #tpu.memory_space<vmem>>, %arg10: memref<1x32xf32, #tpu.memory_space<vmem>>, %arg11: memref<32x32xf32, #tpu.memory_space<vmem>>, %arg12: memref<16x32xf32, #tpu.memory_space<vmem>>, %arg13: memref<1x32xf32, #tpu.memory_space<vmem>>, %arg14: memref<32x16xf32, #tpu.memory_space<vmem>>, %arg15: memref<65x16xf32, #tpu.memory_space<vmem>>, %arg16: memref<8x128xf32, #tpu.memory_space<vmem>>) attributes {dimension_semantics = [#tpu.dimension_semantics<parallel>], iteration_bounds = array<i64: 1>, scalar_prefetch = 0 : i64, scratch_operands = 0 : i64, tpu.core_type = #tpu.core_type<tc>, window_params = [{transform_indices = @transform_0, window_bounds = array<i64: 8, 32>}, {transform_indices = @transform_1, window_bounds = array<i64: 8, 32>}, {transform_indices = @transform_2, window_bounds = array<i64: 8, 16>}, {transform_indices = @transform_3, window_bounds = array<i64: 8, 32>}, {transform_indices = @transform_4, window_bounds = array<i64: 8, 1>}, {pipeline_mode = #tpu.pipeline_mode<synchronous>, transform_indices = @transform_5, window_bounds = array<i64: 32, 32>}, {pipeline_mode = #tpu.pipeline_mode<synchronous>, transform_indices = @transform_6, window_bounds = array<i64: 1, 32>}, {pipeline_mode = #tpu.pipeline_mode<synchronous>, transform_indices = @transform_7, window_bounds = array<i64: 32, 8>}, {pipeline_mode = #tpu.pipeline_mode<synchronous>, transform_indices = @transform_8, window_bounds = array<i64: 32, 32>}, {pipeline_mode = #tpu.pipeline_mode<synchronous>, transform_indices = @transform_9, window_bounds = array<i64: 1, 32>}, {pipeline_mode = #tpu.pipeline_mode<synchronous>, transform_indices = @transform_10, window_bounds = array<i64: 32, 32>}, {pipeline_mode = #tpu.pipeline_mode<synchronous>, transform_indices = @transform_11, window_bounds = array<i64: 16, 32>}, {pipeline_mode = #tpu.pipeline_mode<synchronous>, transform_indices = @transform_12, window_bounds = array<i64: 1, 32>}, {pipeline_mode = #tpu.pipeline_mode<synchronous>, transform_indices = @transform_13, window_bounds = array<i64: 32, 16>}, {pipeline_mode = #tpu.pipeline_mode<synchronous>, transform_indices = @transform_14, window_bounds = array<i64: 65, 16>}, {transform_indices = @transform_15, window_bounds = array<i64: 8, 128>}]} {
    %c0 = arith.constant 0 : index
    %c0_0 = arith.constant 0 : index
    %0 = vector.load %arg6[%c0, %c0_0] : memref<32x32xf32, #tpu.memory_space<vmem>>, vector<32x32xf32>
    %c0_1 = arith.constant 0 : index
    %c0_2 = arith.constant 0 : index
    %1 = vector.load %arg7[%c0_1, %c0_2] : memref<1x32xf32, #tpu.memory_space<vmem>>, vector<1x32xf32>
    %c0_3 = arith.constant 0 : index
    %c0_4 = arith.constant 0 : index
    %2 = vector.load %arg8[%c0_3, %c0_4] : memref<32x8xf32, #tpu.memory_space<vmem>>, vector<32x8xf32>
    %c0_5 = arith.constant 0 : index
    %c0_6 = arith.constant 0 : index
    %3 = vector.load %arg1[%c0_5, %c0_6] : memref<8x32xf32, #tpu.memory_space<vmem>>, vector<8x32xf32>
    %cst = arith.constant dense<0.000000e+00> : vector<8x32xf32>
    %4 = tpu.matmul %3, %0, %cst {dimension_numbers = #tpu.dot_dimension_numbers<[1], [0], [0], [1], [0, 0, 1, 1], [], []>} : vector<8x32xf32>, vector<32x32xf32>, vector<8x32xf32> -> vector<8x32xf32>
    %5 = vector.broadcast %1 : vector<1x32xf32> to vector<8x32xf32>
    %6 = arith.addf %4, %5 : vector<8x32xf32>
    %cst_7 = arith.constant 0.000000e+00 : f32
    %7 = vector.broadcast %cst_7 : f32 to vector<8x32xf32>
    %8 = arith.maximumf %6, %7 : vector<8x32xf32>
    %cst_8 = arith.constant dense<0.000000e+00> : vector<8x8xf32>
    %9 = tpu.matmul %8, %2, %cst_8 {dimension_numbers = #tpu.dot_dimension_numbers<[1], [0], [0], [1], [0, 0, 1, 1], [], []>} : vector<8x32xf32>, vector<32x8xf32>, vector<8x8xf32> -> vector<8x8xf32>
    %c0_9 = arith.constant 0 : index
    %c0_10 = arith.constant 0 : index
    %10 = vector.load %arg2[%c0_9, %c0_10] : memref<8x32xf32, #tpu.memory_space<vmem>>, vector<8x32xf32>
    %cst_11 = arith.constant dense<0.000000e+00> : vector<8x32xf32>
    %11 = tpu.matmul %10, %0, %cst_11 {dimension_numbers = #tpu.dot_dimension_numbers<[1], [0], [0], [1], [0, 0, 1, 1], [], []>} : vector<8x32xf32>, vector<32x32xf32>, vector<8x32xf32> -> vector<8x32xf32>
    %12 = vector.broadcast %1 : vector<1x32xf32> to vector<8x32xf32>
    %13 = arith.addf %11, %12 : vector<8x32xf32>
    %cst_12 = arith.constant 0.000000e+00 : f32
    %14 = vector.broadcast %cst_12 : f32 to vector<8x32xf32>
    %15 = arith.maximumf %13, %14 : vector<8x32xf32>
    %cst_13 = arith.constant dense<0.000000e+00> : vector<8x8xf32>
    %16 = tpu.matmul %15, %2, %cst_13 {dimension_numbers = #tpu.dot_dimension_numbers<[1], [0], [0], [1], [0, 0, 1, 1], [], []>} : vector<8x32xf32>, vector<32x8xf32>, vector<8x8xf32> -> vector<8x8xf32>
    %c0_14 = arith.constant 0 : index
    %c0_15 = arith.constant 0 : index
    %17 = vector.load %arg4[%c0_14, %c0_15] : memref<8x32xf32, #tpu.memory_space<vmem>>, vector<8x32xf32>
    %c0_16 = arith.constant 0 : index
    %c0_17 = arith.constant 0 : index
    %18 = vector.load %arg9[%c0_16, %c0_17] : memref<32x32xf32, #tpu.memory_space<vmem>>, vector<32x32xf32>
    %cst_18 = arith.constant dense<0.000000e+00> : vector<8x32xf32>
    %19 = tpu.matmul %17, %18, %cst_18 {dimension_numbers = #tpu.dot_dimension_numbers<[1], [0], [0], [1], [0, 0, 1, 1], [], []>} : vector<8x32xf32>, vector<32x32xf32>, vector<8x32xf32> -> vector<8x32xf32>
    %c0_19 = arith.constant 0 : index
    %c0_20 = arith.constant 0 : index
    %20 = vector.load %arg10[%c0_19, %c0_20] : memref<1x32xf32, #tpu.memory_space<vmem>>, vector<1x32xf32>
    %21 = vector.broadcast %20 : vector<1x32xf32> to vector<8x32xf32>
    %22 = arith.addf %19, %21 : vector<8x32xf32>
    %cst_21 = arith.constant 0.000000e+00 : f32
    %23 = vector.broadcast %cst_21 : f32 to vector<8x32xf32>
    %24 = arith.maximumf %22, %23 : vector<8x32xf32>
    %c0_22 = arith.constant 0 : index
    %c0_23 = arith.constant 0 : index
    %25 = vector.load %arg11[%c0_22, %c0_23] : memref<32x32xf32, #tpu.memory_space<vmem>>, vector<32x32xf32>
    %cst_24 = arith.constant dense<0.000000e+00> : vector<8x32xf32>
    %26 = tpu.matmul %24, %25, %cst_24 {dimension_numbers = #tpu.dot_dimension_numbers<[1], [0], [0], [1], [0, 0, 1, 1], [], []>} : vector<8x32xf32>, vector<32x32xf32>, vector<8x32xf32> -> vector<8x32xf32>
    %c0_25 = arith.constant 0 : index
    %c0_26 = arith.constant 0 : index
    %27 = vector.load %arg3[%c0_25, %c0_26] : memref<8x16xf32, #tpu.memory_space<vmem>>, vector<8x16xf32>
    %c0_27 = arith.constant 0 : index
    %c0_28 = arith.constant 0 : index
    %28 = vector.load %arg12[%c0_27, %c0_28] : memref<16x32xf32, #tpu.memory_space<vmem>>, vector<16x32xf32>
    %cst_29 = arith.constant dense<0.000000e+00> : vector<8x32xf32>
    %29 = tpu.matmul %27, %28, %cst_29 {dimension_numbers = #tpu.dot_dimension_numbers<[1], [0], [0], [1], [0, 0, 1, 1], [], []>} : vector<8x16xf32>, vector<16x32xf32>, vector<8x32xf32> -> vector<8x32xf32>
    %30 = arith.addf %26, %29 : vector<8x32xf32>
    %c0_30 = arith.constant 0 : index
    %c0_31 = arith.constant 0 : index
    %31 = vector.load %arg13[%c0_30, %c0_31] : memref<1x32xf32, #tpu.memory_space<vmem>>, vector<1x32xf32>
    %32 = vector.broadcast %31 : vector<1x32xf32> to vector<8x32xf32>
    %33 = arith.addf %30, %32 : vector<8x32xf32>
    %cst_32 = arith.constant 0.000000e+00 : f32
    %34 = vector.broadcast %cst_32 : f32 to vector<8x32xf32>
    %35 = arith.maximumf %33, %34 : vector<8x32xf32>
    %c0_33 = arith.constant 0 : index
    %c0_34 = arith.constant 0 : index
    %36 = vector.load %arg14[%c0_33, %c0_34] : memref<32x16xf32, #tpu.memory_space<vmem>>, vector<32x16xf32>
    %cst_35 = arith.constant dense<0.000000e+00> : vector<8x16xf32>
    %37 = tpu.matmul %35, %36, %cst_35 {dimension_numbers = #tpu.dot_dimension_numbers<[1], [0], [0], [1], [0, 0, 1, 1], [], []>} : vector<8x32xf32>, vector<32x16xf32>, vector<8x16xf32> -> vector<8x16xf32>
    %c0_36 = arith.constant 0 : index
    %c0_37 = arith.constant 0 : index
    %38 = vector.load %arg5[%c0_36, %c0_37] : memref<8x1xi32, #tpu.memory_space<vmem>>, vector<8x1xi32>
    %39 = tpu.iota {dimensions = array<i32: 1>} : vector<8x65xi32>
    %40 = vector.broadcast %38 : vector<8x1xi32> to vector<8x65xi32>
    %41 = arith.cmpi eq, %40, %39 : vector<8x65xi32>
    %42 = arith.extui %41 : vector<8x65xi1> to vector<8x65xi32>
    %43 = arith.sitofp %42 : vector<8x65xi32> to vector<8x65xf32>
    %c0_38 = arith.constant 0 : index
    %c0_39 = arith.constant 0 : index
    %44 = vector.load %arg15[%c0_38, %c0_39] : memref<65x16xf32, #tpu.memory_space<vmem>>, vector<65x16xf32>
    %cst_40 = arith.constant dense<0.000000e+00> : vector<8x16xf32>
    %45 = tpu.matmul %43, %44, %cst_40 {dimension_numbers = #tpu.dot_dimension_numbers<[1], [0], [0], [1], [0, 0, 1, 1], [], []>} : vector<8x65xf32>, vector<65x16xf32>, vector<8x16xf32> -> vector<8x16xf32>
    %46 = arith.addf %37, %45 : vector<8x16xf32>
    %cst_41 = arith.constant 0.000000e+00 : f32
    %47 = vector.broadcast %cst_41 : f32 to vector<8x96xf32>
    %48 = tpu.concatenate %9, %16, %46, %47 in 1 : vector<8x8xf32>, vector<8x8xf32>, vector<8x16xf32>, vector<8x96xf32> -> vector<8x128xf32>
    %c0_42 = arith.constant 0 : index
    %c0_43 = arith.constant 0 : index
    %49 = vector.load %arg16[%c0_42, %c0_43] : memref<8x128xf32, #tpu.memory_space<vmem>>, vector<8x128xf32>
    tpu.vector_store %arg16[%c0_42, %c0_43], %48 {strides = array<i32>} : memref<8x128xf32, #tpu.memory_space<vmem>>, vector<8x128xf32>,
    return
  }
  func.func @transform_0(%arg0: i32) -> (i32, i32) {
    %c0_i32 = arith.constant 0 : i32
    %c0_i32_0 = arith.constant 0 : i32
    return %arg0, %c0_i32 : i32, i32
  }
  func.func @transform_1(%arg0: i32) -> (i32, i32) {
    %c0_i32 = arith.constant 0 : i32
    %c0_i32_0 = arith.constant 0 : i32
    return %arg0, %c0_i32 : i32, i32
  }
  func.func @transform_2(%arg0: i32) -> (i32, i32) {
    %c0_i32 = arith.constant 0 : i32
    %c0_i32_0 = arith.constant 0 : i32
    return %arg0, %c0_i32 : i32, i32
  }
  func.func @transform_3(%arg0: i32) -> (i32, i32) {
    %c0_i32 = arith.constant 0 : i32
    %c0_i32_0 = arith.constant 0 : i32
    return %arg0, %c0_i32 : i32, i32
  }
  func.func @transform_4(%arg0: i32) -> (i32, i32) {
    %c0_i32 = arith.constant 0 : i32
    %c0_i32_0 = arith.constant 0 : i32
    return %arg0, %c0_i32 : i32, i32
  }
  func.func @transform_5(%arg0: i32) -> (i32, i32) {
    %c0_i32 = arith.constant 0 : i32
    %c0_i32_0 = arith.constant 0 : i32
    %c0_i32_1 = arith.constant 0 : i32
    return %c0_i32, %c0_i32_0 : i32, i32
  }
  func.func @transform_6(%arg0: i32) -> (i32, i32) {
    %c0_i32 = arith.constant 0 : i32
    %c0_i32_0 = arith.constant 0 : i32
    %c0_i32_1 = arith.constant 0 : i32
    return %c0_i32, %c0_i32_0 : i32, i32
  }
  func.func @transform_7(%arg0: i32) -> (i32, i32) {
    %c0_i32 = arith.constant 0 : i32
    %c0_i32_0 = arith.constant 0 : i32
    %c0_i32_1 = arith.constant 0 : i32
    return %c0_i32, %c0_i32_0 : i32, i32
  }
  func.func @transform_8(%arg0: i32) -> (i32, i32) {
    %c0_i32 = arith.constant 0 : i32
    %c0_i32_0 = arith.constant 0 : i32
    %c0_i32_1 = arith.constant 0 : i32
    return %c0_i32, %c0_i32_0 : i32, i32
  }
  func.func @transform_9(%arg0: i32) -> (i32, i32) {
    %c0_i32 = arith.constant 0 : i32
    %c0_i32_0 = arith.constant 0 : i32
    %c0_i32_1 = arith.constant 0 : i32
    return %c0_i32, %c0_i32_0 : i32, i32
  }
  func.func @transform_10(%arg0: i32) -> (i32, i32) {
    %c0_i32 = arith.constant 0 : i32
    %c0_i32_0 = arith.constant 0 : i32
    %c0_i32_1 = arith.constant 0 : i32
    return %c0_i32, %c0_i32_0 : i32, i32
  }
  func.func @transform_11(%arg0: i32) -> (i32, i32) {
    %c0_i32 = arith.constant 0 : i32
    %c0_i32_0 = arith.constant 0 : i32
    %c0_i32_1 = arith.constant 0 : i32
    return %c0_i32, %c0_i32_0 : i32, i32
  }
  func.func @transform_12(%arg0: i32) -> (i32, i32) {
    %c0_i32 = arith.constant 0 : i32
    %c0_i32_0 = arith.constant 0 : i32
    %c0_i32_1 = arith.constant 0 : i32
    return %c0_i32, %c0_i32_0 : i32, i32
  }
  func.func @transform_13(%arg0: i32) -> (i32, i32) {
    %c0_i32 = arith.constant 0 : i32
    %c0_i32_0 = arith.constant 0 : i32
    %c0_i32_1 = arith.constant 0 : i32
    return %c0_i32, %c0_i32_0 : i32, i32
  }
  func.func @transform_14(%arg0: i32) -> (i32, i32) {
    %c0_i32 = arith.constant 0 : i32
    %c0_i32_0 = arith.constant 0 : i32
    %c0_i32_1 = arith.constant 0 : i32
    return %c0_i32, %c0_i32_0 : i32, i32
  }
  func.func @transform_15(%arg0: i32) -> (i32, i32) {
    %c0_i32 = arith.constant 0 : i32
    %c0_i32_0 = arith.constant 0 : i32
    return %arg0, %c0_i32 : i32, i32
  }
}

</mosaic_0001>

<llo_original>
// kernel: tpu_custom_call.1
$region0: #{tpu_custom_call.1}
  #allocation0 [shape = 'u32[]', space=smem, size = 0x4, offset = 0x4, fixed_abs, tag = 'smem constant byte address 0x4 - core index']
  #allocation1 [shape = 'u32[144,128]{1,0:T(1,128)}', space=vmem, size = 0x12000, scoped, tag = 'internal scratch']
  %s0 = inlined_call_operand.vmem [shape: f32[8,32], index: 0, kind: input, shape index: {}]
  %s1 = inlined_call_operand.vmem [shape: f32[8,32], index: 1, kind: input, shape index: {}]
  %s2 = inlined_call_operand.vmem [shape: f32[8,16], index: 2, kind: input, shape index: {}]
  %s3 = inlined_call_operand.vmem [shape: f32[8,32], index: 3, kind: input, shape index: {}]
  %s4 = inlined_call_operand.vmem [shape: s32[8,1], index: 4, kind: input, shape index: {}]
  %s5 = inlined_call_operand.vmem [shape: f32[32,32], index: 5, kind: input, shape index: {}]
  %s6 = inlined_call_operand.vmem [shape: f32[1,32], index: 6, kind: input, shape index: {}]
  %s7 = inlined_call_operand.vmem [shape: f32[32,8], index: 7, kind: input, shape index: {}]
  %s8 = inlined_call_operand.vmem [shape: f32[32,32], index: 8, kind: input, shape index: {}]
  %s9 = inlined_call_operand.vmem [shape: f32[1,32], index: 9, kind: input, shape index: {}]
  %s10 = inlined_call_operand.vmem [shape: f32[32,32], index: 10, kind: input, shape index: {}]
  %s11 = inlined_call_operand.vmem [shape: f32[16,32], index: 11, kind: input, shape index: {}]
  %s12 = inlined_call_operand.vmem [shape: f32[1,32], index: 12, kind: input, shape index: {}]
  %s13 = inlined_call_operand.vmem [shape: f32[32,16], index: 13, kind: input, shape index: {}]
  %s14 = inlined_call_operand.vmem [shape: f32[65,16], index: 14, kind: input, shape index: {}]
  %s15 = inlined_call_operand.hbm [shape: f32[8,128], index: 15, kind: output, shape index: {}]
  %s16 = sld [smem:[#allocation0]]
  $region70: #{tpu_custom_call.1} parent=0
    _
  %s18 = ssub.s32 1, %s16
  %s19 = scalar_select 0, %s18, %s16
  $region1: #{tpu_custom_call.1} parent=0
    #allocation2 [shape = 'u8[4096]{0}', space=vmem, size = 0x1000, scoped, tag = 'output window, operand 0, single buffered']
    #allocation3 [shape = 's32[1]{0}', space=sflag, size = 0x4, scoped, tag = 'scoped memory for tpu_custom_call.1']
    %20 = vsyncpa [#allocation3], 0
    // Predicated region
    $region2: #{tpu_custom_call.1} parent=1 // pred_check
      _
    $region3: #{tpu_custom_call.1} parent=1 // pred_check_branch
      %22 = sbr.rel (0) target = $region5
    $region4: #{tpu_custom_call.1} parent=1 // pred_region
      _
    $region5: #{tpu_custom_call.1} parent=1 // pred_fallthru
      _
    // Predicated region
    $region6: #{tpu_custom_call.1} parent=1 // pred_check
      _
    $region7: #{tpu_custom_call.1} parent=1 // pred_check_branch
      %24 = sbr.rel (0) target = $region9
    $region8: #{tpu_custom_call.1} parent=1 // pred_region
      _
    $region9: #{tpu_custom_call.1} parent=1 // pred_fallthru
      _
    // Predicated region
    $region10: #{tpu_custom_call.1} parent=1 // pred_check
      _
    $region11: #{tpu_custom_call.1} parent=1 // pred_check_branch
      %26 = sbr.rel (0) target = $region13
    $region12: #{tpu_custom_call.1} parent=1 // pred_region
      _
    $region13: #{tpu_custom_call.1} parent=1 // pred_fallthru
      _
    // Predicated region
    $region14: #{tpu_custom_call.1} parent=1 // pred_check
      _
    $region15: #{tpu_custom_call.1} parent=1 // pred_check_branch
      %28 = sbr.rel (0) target = $region17
    $region16: #{tpu_custom_call.1} parent=1 // pred_region
      _
    $region17: #{tpu_custom_call.1} parent=1 // pred_fallthru
      _
    // Predicated region
    $region18: #{tpu_custom_call.1} parent=1 // pred_check
      _
    $region19: #{tpu_custom_call.1} parent=1 // pred_check_branch
      %30 = sbr.rel (0) target = $region21
    $region20: #{tpu_custom_call.1} parent=1 // pred_region
      _
    $region21: #{tpu_custom_call.1} parent=1 // pred_fallthru
      _
    // Predicated region
    $region22: #{tpu_custom_call.1} parent=1 // pred_check
      _
    $region23: #{tpu_custom_call.1} parent=1 // pred_check_branch
      %32 = sbr.rel (0) target = $region25
    $region24: #{tpu_custom_call.1} parent=1 // pred_region
      _
    $region25: #{tpu_custom_call.1} parent=1 // pred_fallthru
      _
    // Predicated region
    $region26: #{tpu_custom_call.1} parent=1 // pred_check
      _
    $region27: #{tpu_custom_call.1} parent=1 // pred_check_branch
      %34 = sbr.rel (0) target = $region29
    $region28: #{tpu_custom_call.1} parent=1 // pred_region
      _
    $region29: #{tpu_custom_call.1} parent=1 // pred_fallthru
      _
    // Predicated region
    $region30: #{tpu_custom_call.1} parent=1 // pred_check
      _
    $region31: #{tpu_custom_call.1} parent=1 // pred_check_branch
      %36 = sbr.rel (0) target = $region33
    $region32: #{tpu_custom_call.1} parent=1 // pred_region
      _
    $region33: #{tpu_custom_call.1} parent=1 // pred_fallthru
      _
    // Predicated region
    $region34: #{tpu_custom_call.1} parent=1 // pred_check
      _
    $region35: #{tpu_custom_call.1} parent=1 // pred_check_branch
      %38 = sbr.rel (0) target = $region37
    $region36: #{tpu_custom_call.1} parent=1 // pred_region
      _
    $region37: #{tpu_custom_call.1} parent=1 // pred_fallthru
      _
    // Predicated region
    $region38: #{tpu_custom_call.1} parent=1 // pred_check
      _
    $region39: #{tpu_custom_call.1} parent=1 // pred_check_branch
      %40 = sbr.rel (0) target = $region41
    $region40: #{tpu_custom_call.1} parent=1 // pred_region
      _
    $region41: #{tpu_custom_call.1} parent=1 // pred_fallthru
      _
    // Predicated region
    $region42: #{tpu_custom_call.1} parent=1 // pred_check
      _
    $region43: #{tpu_custom_call.1} parent=1 // pred_check_branch
      %42 = sbr.rel (0) target = $region45
    $region44: #{tpu_custom_call.1} parent=1 // pred_region
      _
    $region45: #{tpu_custom_call.1} parent=1 // pred_fallthru
      _
    // Predicated region
    $region46: #{tpu_custom_call.1} parent=1 // pred_check
      _
    $region47: #{tpu_custom_call.1} parent=1 // pred_check_branch
      %44 = sbr.rel (0) target = $region49
    $region48: #{tpu_custom_call.1} parent=1 // pred_region
      _
    $region49: #{tpu_custom_call.1} parent=1 // pred_fallthru
      _
    // Predicated region
    $region50: #{tpu_custom_call.1} parent=1 // pred_check
      _
    $region51: #{tpu_custom_call.1} parent=1 // pred_check_branch
      %46 = sbr.rel (0) target = $region53
    $region52: #{tpu_custom_call.1} parent=1 // pred_region
      _
    $region53: #{tpu_custom_call.1} parent=1 // pred_fallthru
      _
    // Predicated region
    $region54: #{tpu_custom_call.1} parent=1 // pred_check
      _
    $region55: #{tpu_custom_call.1} parent=1 // pred_check_branch
      %48 = sbr.rel (0) target = $region57
    $region56: #{tpu_custom_call.1} parent=1 // pred_region
      _
    $region57: #{tpu_custom_call.1} parent=1 // pred_fallthru
      _
    // Predicated region
    $region58: #{tpu_custom_call.1} parent=1 // pred_check
      _
    $region59: #{tpu_custom_call.1} parent=1 // pred_check_branch
      %50 = sbr.rel (0) target = $region61
    $region60: #{tpu_custom_call.1} parent=1 // pred_region
      _
    $region61: #{tpu_custom_call.1} parent=1 // pred_fallthru
      _
    %v51 = vld [vmem:[%s5] sm:$0xff]
    %v52 = vld [vmem:[%s5 + $0x8] sm:$0xff]
    %v53 = vld [vmem:[%s5 + $0x10] sm:$0xff]
    %v54 = vld [vmem:[%s5 + $0x18] sm:$0xff]
    %v55 = vld [vmem:[%s6] sm:$0x1]
    %v56 = vld [vmem:[%s7] sm:$0xff]
    %v57 = vld [vmem:[%s7 + $0x8] sm:$0xff]
    %v58 = vld [vmem:[%s7 + $0x10] sm:$0xff]
    %v59 = vld [vmem:[%s7 + $0x18] sm:$0xff]
    %v60 = vld [vmem:[%s0] sm:$0xff]
    %v62 = vlaneseq
    %v63 = vshrl.u32 %v62, 7
    %v64 = vsub.s32 0, %v63
    %v65 = vrot.slane %v55, %v64
    %vm67 = vcmask 261120
    %v69 = vsel %vm67, %v60, 0
    %71 = vmatprep.subr.mxu0 0.0
    %72 = vmatpush1.msra.mxu0 %v51
    %73 = vmatprep.subr.mxu0 0.0
    %74 = vmatpush1.msra.mxu0 %v52
    %75 = vmatprep.subr.mxu0 0.0
    %76 = vmatpush1.msra.mxu0 %v53
    %77 = vmatprep.subr.mxu0 0.0
    %78 = vmatpush1.msra.mxu0 %v54
    %79 = vmatprep.subr.mxu0 0.0
    %80 = vmatpush1.msra.mxu0 0.0
    %81 = vmatprep.subr.mxu0 0.0
    %82 = vmatpush1.msra.mxu0 0.0
    %83 = vmatprep.subr.mxu0 0.0
    %84 = vmatpush1.msra.mxu0 0.0
    %85 = vmatprep.subr.mxu0 0.0
    %86 = vmatpush1.msra.mxu0 0.0
    %87 = vmatprep.subr.mxu0 0.0
    %88 = vmatpush1.msra.mxu0 0.0
    %89 = vmatprep.subr.mxu0 0.0
    %90 = vmatpush1.msra.mxu0 0.0
    %91 = vmatprep.subr.mxu0 0.0
    %92 = vmatpush1.msra.mxu0 0.0
    %93 = vmatprep.subr.mxu0 0.0
    %94 = vmatpush1.msra.mxu0 0.0
    %95 = vmatprep.subr.mxu0 0.0
    %96 = vmatpush1.msra.mxu0 0.0
    %97 = vmatprep.subr.mxu0 0.0
    %98 = vmatpush1.msra.mxu0 0.0
    %99 = vmatprep.subr.mxu0 0.0
    %100 = vmatpush1.msra.mxu0 0.0
    %101 = vmatprep.subr.mxu0 0.0
    %102 = vmatpush1.msra.mxu0 0.0
    %103 = vmatprep.subr.mxu0 0.0
    %104 = vmatpush1.msra.mxu0 0.0
    %105 = vmatprep.subr.mxu0 0.0
    %106 = vmatpush1.msra.mxu0 0.0
    %107 = vmatprep.subr.mxu0 0.0
    %108 = vmatpush1.msra.mxu0 0.0
    %109 = vmatprep.subr.mxu0 0.0
    %110 = vmatpush1.msra.mxu0 0.0
    %111 = vmatprep.subr.mxu0 0.0
    %112 = vmatpush1.msra.mxu0 0.0
    %113 = vmatprep.subr.mxu0 0.0
    %114 = vmatpush1.msra.mxu0 0.0
    %115 = vmatprep.subr.mxu0 0.0
    %116 = vmatpush1.msra.mxu0 0.0
    %117 = vmatprep.subr.mxu0 0.0
    %118 = vmatpush1.msra.mxu0 0.0
    %119 = vmatprep.subr.mxu0 0.0
    %120 = vmatpush1.msra.mxu0 0.0
    %121 = vmatprep.subr.mxu0 0.0
    %122 = vmatpush1.msra.mxu0 0.0
    %123 = vmatprep.subr.mxu0 0.0
    %124 = vmatpush1.msra.mxu0 0.0
    %125 = vmatprep.subr.mxu0 0.0
    %126 = vmatpush1.msra.mxu0 0.0
    %127 = vmatprep.subr.mxu0 0.0
    %128 = vmatpush1.msra.mxu0 0.0
    %129 = vmatprep.subr.mxu0 0.0
    %130 = vmatpush1.msra.mxu0 0.0
    %131 = vmatprep.subr.mxu0 0.0
    %132 = vmatpush1.msra.mxu0 0.0
    %133 = vmatprep.subr.mxu0 0.0
    %134 = vmatpush1.msra.mxu0 0.0
    %135 = vmatprep.mubr.f32.mxu0 0.0
    %136 = vmatmul.mubr.f32.gmra.mrb[0].mxu0 %v69
    %v137 = vpop.f32.mrb[0].mxu0
    %v138 = vadd.f32 %v65, %v137
    %v139 = vpop.f32.mrb[0].mxu0
    %140 = vdwg.mxu0
    %v141 = vmax.f32 %v138, 0.0
    %v143 = vsel %vm67, %v141, 0
    %145 = vmatprep.subr.mxu0 0.0
    %146 = vmatpush1.msra.mxu0 %v56
    %147 = vmatprep.subr.mxu0 0.0
    %148 = vmatpush1.msra.mxu0 %v57
    %149 = vmatprep.subr.mxu0 0.0
    %150 = vmatpush1.msra.mxu0 %v58
    %151 = vmatprep.subr.mxu0 0.0
    %152 = vmatpush1.msra.mxu0 %v59
    %153 = vmatprep.subr.mxu0 0.0
    %154 = vmatpush1.msra.mxu0 0.0
    %155 = vmatprep.subr.mxu0 0.0
    %156 = vmatpush1.msra.mxu0 0.0
    %157 = vmatprep.subr.mxu0 0.0
    %158 = vmatpush1.msra.mxu0 0.0
    %159 = vmatprep.subr.mxu0 0.0
    %160 = vmatpush1.msra.mxu0 0.0
    %161 = vmatprep.subr.mxu0 0.0
    %162 = vmatpush1.msra.mxu0 0.0
    %163 = vmatprep.subr.mxu0 0.0
    %164 = vmatpush1.msra.mxu0 0.0
    %165 = vmatprep.subr.mxu0 0.0
    %166 = vmatpush1.msra.mxu0 0.0
    %167 = vmatprep.subr.mxu0 0.0
    %168 = vmatpush1.msra.mxu0 0.0
    %169 = vmatprep.subr.mxu0 0.0
    %170 = vmatpush1.msra.mxu0 0.0
    %171 = vmatprep.subr.mxu0 0.0
    %172 = vmatpush1.msra.mxu0 0.0
    %173 = vmatprep.subr.mxu0 0.0
    %174 = vmatpush1.msra.mxu0 0.0
    %175 = vmatprep.subr.mxu0 0.0
    %176 = vmatpush1.msra.mxu0 0.0
    %177 = vmatprep.subr.mxu0 0.0
    %178 = vmatpush1.msra.mxu0 0.0
    %179 = vmatprep.subr.mxu0 0.0
    %180 = vmatpush1.msra.mxu0 0.0
    %181 = vmatprep.subr.mxu0 0.0
    %182 = vmatpush1.msra.mxu0 0.0
    %183 = vmatprep.subr.mxu0 0.0
    %184 = vmatpush1.msra.mxu0 0.0
    %185 = vmatprep.subr.mxu0 0.0
    %186 = vmatpush1.msra.mxu0 0.0
    %187 = vmatprep.subr.mxu0 0.0
    %188 = vmatpush1.msra.mxu0 0.0
    %189 = vmatprep.subr.mxu0 0.0
    %190 = vmatpush1.msra.mxu0 0.0
    %191 = vmatprep.subr.mxu0 0.0
    %192 = vmatpush1.msra.mxu0 0.0
    %193 = vmatprep.subr.mxu0 0.0
    %194 = vmatpush1.msra.mxu0 0.0
    %195 = vmatprep.subr.mxu0 0.0
    %196 = vmatpush1.msra.mxu0 0.0
    %197 = vmatprep.subr.mxu0 0.0
    %198 = vmatpush1.msra.mxu0 0.0
    %199 = vmatprep.subr.mxu0 0.0
    %200 = vmatpush1.msra.mxu0 0.0
    %201 = vmatprep.subr.mxu0 0.0
    %202 = vmatpush1.msra.mxu0 0.0
    %203 = vmatprep.subr.mxu0 0.0
    %204 = vmatpush1.msra.mxu0 0.0
    %205 = vmatprep.subr.mxu0 0.0
    %206 = vmatpush1.msra.mxu0 0.0
    %207 = vmatprep.subr.mxu0 0.0
    %208 = vmatpush1.msra.mxu0 0.0
    %209 = vmatprep.mubr.f32.mxu0 0.0
    %210 = vmatmul.mubr.f32.gmra.mrb[0].mxu0 %v143
    %v211 = vpop.f32.mrb[0].mxu0
    %v212 = vadd.f32 0.0, %v211
    %v213 = vpop.f32.mrb[0].mxu0
    %214 = vdwg.mxu0
    %v215 = vld [vmem:[%s1] sm:$0xff]
    %v217 = vsel %vm67, %v215, 0
    %219 = vmatprep.subr.mxu0 0.0
    %220 = vmatpush1.msra.mxu0 %v51
    %221 = vmatprep.subr.mxu0 0.0
    %222 = vmatpush1.msra.mxu0 %v52
    %223 = vmatprep.subr.mxu0 0.0
    %224 = vmatpush1.msra.mxu0 %v53
    %225 = vmatprep.subr.mxu0 0.0
    %226 = vmatpush1.msra.mxu0 %v54
    %227 = vmatprep.subr.mxu0 0.0
    %228 = vmatpush1.msra.mxu0 0.0
    %229 = vmatprep.subr.mxu0 0.0
    %230 = vmatpush1.msra.mxu0 0.0
    %231 = vmatprep.subr.mxu0 0.0
    %232 = vmatpush1.msra.mxu0 0.0
    %233 = vmatprep.subr.mxu0 0.0
    %234 = vmatpush1.msra.mxu0 0.0
    %235 = vmatprep.subr.mxu0 0.0
    %236 = vmatpush1.msra.mxu0 0.0
    %237 = vmatprep.subr.mxu0 0.0
    %238 = vmatpush1.msra.mxu0 0.0
    %239 = vmatprep.subr.mxu0 0.0
    %240 = vmatpush1.msra.mxu0 0.0
    %241 = vmatprep.subr.mxu0 0.0
    %242 = vmatpush1.msra.mxu0 0.0
    %243 = vmatprep.subr.mxu0 0.0
    %244 = vmatpush1.msra.mxu0 0.0
    %245 = vmatprep.subr.mxu0 0.0
    %246 = vmatpush1.msra.mxu0 0.0
    %247 = vmatprep.subr.mxu0 0.0
    %248 = vmatpush1.msra.mxu0 0.0
    %249 = vmatprep.subr.mxu0 0.0
    %250 = vmatpush1.msra.mxu0 0.0
    %251 = vmatprep.subr.mxu0 0.0
    %252 = vmatpush1.msra.mxu0 0.0
    %253 = vmatprep.subr.mxu0 0.0
    %254 = vmatpush1.msra.mxu0 0.0
    %255 = vmatprep.subr.mxu0 0.0
    %256 = vmatpush1.msra.mxu0 0.0
    %257 = vmatprep.subr.mxu0 0.0
    %258 = vmatpush1.msra.mxu0 0.0
    %259 = vmatprep.subr.mxu0 0.0
    %260 = vmatpush1.msra.mxu0 0.0
    %261 = vmatprep.subr.mxu0 0.0
    %262 = vmatpush1.msra.mxu0 0.0
    %263 = vmatprep.subr.mxu0 0.0
    %264 = vmatpush1.msra.mxu0 0.0
    %265 = vmatprep.subr.mxu0 0.0
    %266 = vmatpush1.msra.mxu0 0.0
    %267 = vmatprep.subr.mxu0 0.0
    %268 = vmatpush1.msra.mxu0 0.0
    %269 = vmatprep.subr.mxu0 0.0
    %270 = vmatpush1.msra.mxu0 0.0
    %271 = vmatprep.subr.mxu0 0.0
    %272 = vmatpush1.msra.mxu0 0.0
    %273 = vmatprep.subr.mxu0 0.0
    %274 = vmatpush1.msra.mxu0 0.0
    %275 = vmatprep.subr.mxu0 0.0
    %276 = vmatpush1.msra.mxu0 0.0
    %277 = vmatprep.subr.mxu0 0.0
    %278 = vmatpush1.msra.mxu0 0.0
    %279 = vmatprep.subr.mxu0 0.0
    %280 = vmatpush1.msra.mxu0 0.0
    %281 = vmatprep.subr.mxu0 0.0
    %282 = vmatpush1.msra.mxu0 0.0
    %283 = vmatprep.mubr.f32.mxu0 0.0
    %284 = vmatmul.mubr.f32.gmra.mrb[0].mxu0 %v217
    %v285 = vpop.f32.mrb[0].mxu0
    %v286 = vadd.f32 %v65, %v285
    %v287 = vpop.f32.mrb[0].mxu0
    %288 = vdwg.mxu0
    %v289 = vmax.f32 %v286, 0.0
    %v291 = vsel %vm67, %v289, 0
    %293 = vmatprep.subr.mxu0 0.0
    %294 = vmatpush1.msra.mxu0 %v56
    %295 = vmatprep.subr.mxu0 0.0
    %296 = vmatpush1.msra.mxu0 %v57
    %297 = vmatprep.subr.mxu0 0.0
    %298 = vmatpush1.msra.mxu0 %v58
    %299 = vmatprep.subr.mxu0 0.0
    %300 = vmatpush1.msra.mxu0 %v59
    %301 = vmatprep.subr.mxu0 0.0
    %302 = vmatpush1.msra.mxu0 0.0
    %303 = vmatprep.subr.mxu0 0.0
    %304 = vmatpush1.msra.mxu0 0.0
    %305 = vmatprep.subr.mxu0 0.0
    %306 = vmatpush1.msra.mxu0 0.0
    %307 = vmatprep.subr.mxu0 0.0
    %308 = vmatpush1.msra.mxu0 0.0
    %309 = vmatprep.subr.mxu0 0.0
    %310 = vmatpush1.msra.mxu0 0.0
    %311 = vmatprep.subr.mxu0 0.0
    %312 = vmatpush1.msra.mxu0 0.0
    %313 = vmatprep.subr.mxu0 0.0
    %314 = vmatpush1.msra.mxu0 0.0
    %315 = vmatprep.subr.mxu0 0.0
    %316 = vmatpush1.msra.mxu0 0.0
    %317 = vmatprep.subr.mxu0 0.0
    %318 = vmatpush1.msra.mxu0 0.0
    %319 = vmatprep.subr.mxu0 0.0
    %320 = vmatpush1.msra.mxu0 0.0
    %321 = vmatprep.subr.mxu0 0.0
    %322 = vmatpush1.msra.mxu0 0.0
    %323 = vmatprep.subr.mxu0 0.0
    %324 = vmatpush1.msra.mxu0 0.0
    %325 = vmatprep.subr.mxu0 0.0
    %326 = vmatpush1.msra.mxu0 0.0
    %327 = vmatprep.subr.mxu0 0.0
    %328 = vmatpush1.msra.mxu0 0.0
    %329 = vmatprep.subr.mxu0 0.0
    %330 = vmatpush1.msra.mxu0 0.0
    %331 = vmatprep.subr.mxu0 0.0
    %332 = vmatpush1.msra.mxu0 0.0
    %333 = vmatprep.subr.mxu0 0.0
    %334 = vmatpush1.msra.mxu0 0.0
    %335 = vmatprep.subr.mxu0 0.0
    %336 = vmatpush1.msra.mxu0 0.0
    %337 = vmatprep.subr.mxu0 0.0
    %338 = vmatpush1.msra.mxu0 0.0
    %339 = vmatprep.subr.mxu0 0.0
    %340 = vmatpush1.msra.mxu0 0.0
    %341 = vmatprep.subr.mxu0 0.0
    %342 = vmatpush1.msra.mxu0 0.0
    %343 = vmatprep.subr.mxu0 0.0
    %344 = vmatpush1.msra.mxu0 0.0
    %345 = vmatprep.subr.mxu0 0.0
    %346 = vmatpush1.msra.mxu0 0.0
    %347 = vmatprep.subr.mxu0 0.0
    %348 = vmatpush1.msra.mxu0 0.0
    %349 = vmatprep.subr.mxu0 0.0
    %350 = vmatpush1.msra.mxu0 0.0
    %351 = vmatprep.subr.mxu0 0.0
    %352 = vmatpush1.msra.mxu0 0.0
    %353 = vmatprep.subr.mxu0 0.0
    %354 = vmatpush1.msra.mxu0 0.0
    %355 = vmatprep.subr.mxu0 0.0
    %356 = vmatpush1.msra.mxu0 0.0
    %357 = vmatprep.mubr.f32.mxu0 0.0
    %358 = vmatmul.mubr.f32.gmra.mrb[0].mxu0 %v291
    %v359 = vpop.f32.mrb[0].mxu0
    %v360 = vadd.f32 0.0, %v359
    %v361 = vpop.f32.mrb[0].mxu0
    %362 = vdwg.mxu0
    %v363 = vld [vmem:[%s3] sm:$0xff]
    %v364 = vld [vmem:[%s8] sm:$0xff]
    %v365 = vld [vmem:[%s8 + $0x8] sm:$0xff]
    %v366 = vld [vmem:[%s8 + $0x10] sm:$0xff]
    %v367 = vld [vmem:[%s8 + $0x18] sm:$0xff]
    %v368 = vld [vmem:[%s9] sm:$0x1]
    %v370 = vlaneseq
    %v371 = vshrl.u32 %v370, 7
    %v372 = vsub.s32 0, %v371
    %v373 = vrot.slane %v368, %v372
    %v376 = vsel %vm67, %v363, 0
    %378 = vmatprep.subr.mxu0 0.0
    %379 = vmatpush1.msra.mxu0 %v364
    %380 = vmatprep.subr.mxu0 0.0
    %381 = vmatpush1.msra.mxu0 %v365
    %382 = vmatprep.subr.mxu0 0.0
    %383 = vmatpush1.msra.mxu0 %v366
    %384 = vmatprep.subr.mxu0 0.0
    %385 = vmatpush1.msra.mxu0 %v367
    %386 = vmatprep.subr.mxu0 0.0
    %387 = vmatpush1.msra.mxu0 0.0
    %388 = vmatprep.subr.mxu0 0.0
    %389 = vmatpush1.msra.mxu0 0.0
    %390 = vmatprep.subr.mxu0 0.0
    %391 = vmatpush1.msra.mxu0 0.0
    %392 = vmatprep.subr.mxu0 0.0
    %393 = vmatpush1.msra.mxu0 0.0
    %394 = vmatprep.subr.mxu0 0.0
    %395 = vmatpush1.msra.mxu0 0.0
    %396 = vmatprep.subr.mxu0 0.0
    %397 = vmatpush1.msra.mxu0 0.0
    %398 = vmatprep.subr.mxu0 0.0
    %399 = vmatpush1.msra.mxu0 0.0
    %400 = vmatprep.subr.mxu0 0.0
    %401 = vmatpush1.msra.mxu0 0.0
    %402 = vmatprep.subr.mxu0 0.0
    %403 = vmatpush1.msra.mxu0 0.0
    %404 = vmatprep.subr.mxu0 0.0
    %405 = vmatpush1.msra.mxu0 0.0
    %406 = vmatprep.subr.mxu0 0.0
    %407 = vmatpush1.msra.mxu0 0.0
    %408 = vmatprep.subr.mxu0 0.0
    %409 = vmatpush1.msra.mxu0 0.0
    %410 = vmatprep.subr.mxu0 0.0
    %411 = vmatpush1.msra.mxu0 0.0
    %412 = vmatprep.subr.mxu0 0.0
    %413 = vmatpush1.msra.mxu0 0.0
    %414 = vmatprep.subr.mxu0 0.0
    %415 = vmatpush1.msra.mxu0 0.0
    %416 = vmatprep.subr.mxu0 0.0
    %417 = vmatpush1.msra.mxu0 0.0
    %418 = vmatprep.subr.mxu0 0.0
    %419 = vmatpush1.msra.mxu0 0.0
    %420 = vmatprep.subr.mxu0 0.0
    %421 = vmatpush1.msra.mxu0 0.0
    %422 = vmatprep.subr.mxu0 0.0
    %423 = vmatpush1.msra.mxu0 0.0
    %424 = vmatprep.subr.mxu0 0.0
    %425 = vmatpush1.msra.mxu0 0.0
    %426 = vmatprep.subr.mxu0 0.0
    %427 = vmatpush1.msra.mxu0 0.0
    %428 = vmatprep.subr.mxu0 0.0
    %429 = vmatpush1.msra.mxu0 0.0
    %430 = vmatprep.subr.mxu0 0.0
    %431 = vmatpush1.msra.mxu0 0.0
    %432 = vmatprep.subr.mxu0 0.0
    %433 = vmatpush1.msra.mxu0 0.0
    %434 = vmatprep.subr.mxu0 0.0
    %435 = vmatpush1.msra.mxu0 0.0
    %436 = vmatprep.subr.mxu0 0.0
    %437 = vmatpush1.msra.mxu0 0.0
    %438 = vmatprep.subr.mxu0 0.0
    %439 = vmatpush1.msra.mxu0 0.0
    %440 = vmatprep.subr.mxu0 0.0
    %441 = vmatpush1.msra.mxu0 0.0
    %442 = vmatprep.mubr.f32.mxu0 0.0
    %443 = vmatmul.mubr.f32.gmra.mrb[0].mxu0 %v376
    %v444 = vpop.f32.mrb[0].mxu0
    %v445 = vadd.f32 %v373, %v444
    %v446 = vpop.f32.mrb[0].mxu0
    %447 = vdwg.mxu0
    %v448 = vmax.f32 %v445, 0.0
    %v449 = vld [vmem:[%s10] sm:$0xff]
    %v450 = vld [vmem:[%s10 + $0x8] sm:$0xff]
    %v451 = vld [vmem:[%s10 + $0x10] sm:$0xff]
    %v452 = vld [vmem:[%s10 + $0x18] sm:$0xff]
    %v453 = vld [vmem:[%s2] sm:$0xff]
    %v454 = vld [vmem:[%s11] sm:$0xff]
    %v455 = vld [vmem:[%s11 + $0x8] sm:$0xff]
    %vm456 = vcmask 130048
    %v458 = vsel %vm456, %v453, 0
    %460 = vmatprep.subr.mxu0 0.0
    %461 = vmatpush1.msra.mxu0 %v454
    %462 = vmatprep.subr.mxu0 0.0
    %463 = vmatpush1.msra.mxu0 %v455
    %464 = vmatprep.subr.mxu0 0.0
    %465 = vmatpush1.msra.mxu0 0.0
    %466 = vmatprep.subr.mxu0 0.0
    %467 = vmatpush1.msra.mxu0 0.0
    %468 = vmatprep.subr.mxu0 0.0
    %469 = vmatpush1.msra.mxu0 0.0
    %470 = vmatprep.subr.mxu0 0.0
    %471 = vmatpush1.msra.mxu0 0.0
    %472 = vmatprep.subr.mxu0 0.0
    %473 = vmatpush1.msra.mxu0 0.0
    %474 = vmatprep.subr.mxu0 0.0
    %475 = vmatpush1.msra.mxu0 0.0
    %476 = vmatprep.subr.mxu0 0.0
    %477 = vmatpush1.msra.mxu0 0.0
    %478 = vmatprep.subr.mxu0 0.0
    %479 = vmatpush1.msra.mxu0 0.0
    %480 = vmatprep.subr.mxu0 0.0
    %481 = vmatpush1.msra.mxu0 0.0
    %482 = vmatprep.subr.mxu0 0.0
    %483 = vmatpush1.msra.mxu0 0.0
    %484 = vmatprep.subr.mxu0 0.0
    %485 = vmatpush1.msra.mxu0 0.0
    %486 = vmatprep.subr.mxu0 0.0
    %487 = vmatpush1.msra.mxu0 0.0
    %488 = vmatprep.subr.mxu0 0.0
    %489 = vmatpush1.msra.mxu0 0.0
    %490 = vmatprep.subr.mxu0 0.0
    %491 = vmatpush1.msra.mxu0 0.0
    %492 = vmatprep.subr.mxu0 0.0
    %493 = vmatpush1.msra.mxu0 0.0
    %494 = vmatprep.subr.mxu0 0.0
    %495 = vmatpush1.msra.mxu0 0.0
    %496 = vmatprep.subr.mxu0 0.0
    %497 = vmatpush1.msra.mxu0 0.0
    %498 = vmatprep.subr.mxu0 0.0
    %499 = vmatpush1.msra.mxu0 0.0
    %500 = vmatprep.subr.mxu0 0.0
    %501 = vmatpush1.msra.mxu0 0.0
    %502 = vmatprep.subr.mxu0 0.0
    %503 = vmatpush1.msra.mxu0 0.0
    %504 = vmatprep.subr.mxu0 0.0
    %505 = vmatpush1.msra.mxu0 0.0
    %506 = vmatprep.subr.mxu0 0.0
    %507 = vmatpush1.msra.mxu0 0.0
    %508 = vmatprep.subr.mxu0 0.0
    %509 = vmatpush1.msra.mxu0 0.0
    %510 = vmatprep.subr.mxu0 0.0
    %511 = vmatpush1.msra.mxu0 0.0
    %512 = vmatprep.subr.mxu0 0.0
    %513 = vmatpush1.msra.mxu0 0.0
    %514 = vmatprep.subr.mxu0 0.0
    %515 = vmatpush1.msra.mxu0 0.0
    %516 = vmatprep.subr.mxu0 0.0
    %517 = vmatpush1.msra.mxu0 0.0
    %518 = vmatprep.subr.mxu0 0.0
    %519 = vmatpush1.msra.mxu0 0.0
    %520 = vmatprep.subr.mxu0 0.0
    %521 = vmatpush1.msra.mxu0 0.0
    %522 = vmatprep.subr.mxu0 0.0
    %523 = vmatpush1.msra.mxu0 0.0
    %524 = vmatprep.mubr.f32.mxu0 0.0
    %525 = vmatmul.mubr.f32.gmra.mrb[0].mxu0 %v458
    %v526 = vpop.f32.mrb[0].mxu0
    %v527 = vadd.f32 0.0, %v526
    %v528 = vpop.f32.mrb[0].mxu0
    %529 = vdwg.mxu0
    %v531 = vsel %vm67, %v448, 0
    %533 = vmatprep.subr.mxu0 0.0
    %534 = vmatpush1.msra.mxu0 %v449
    %535 = vmatprep.subr.mxu0 0.0
    %536 = vmatpush1.msra.mxu0 %v450
    %537 = vmatprep.subr.mxu0 0.0
    %538 = vmatpush1.msra.mxu0 %v451
    %539 = vmatprep.subr.mxu0 0.0
    %540 = vmatpush1.msra.mxu0 %v452
    %541 = vmatprep.subr.mxu0 0.0
    %542 = vmatpush1.msra.mxu0 0.0
    %543 = vmatprep.subr.mxu0 0.0
    %544 = vmatpush1.msra.mxu0 0.0
    %545 = vmatprep.subr.mxu0 0.0
    %546 = vmatpush1.msra.mxu0 0.0
    %547 = vmatprep.subr.mxu0 0.0
    %548 = vmatpush1.msra.mxu0 0.0
    %549 = vmatprep.subr.mxu0 0.0
    %550 = vmatpush1.msra.mxu0 0.0
    %551 = vmatprep.subr.mxu0 0.0
    %552 = vmatpush1.msra.mxu0 0.0
    %553 = vmatprep.subr.mxu0 0.0
    %554 = vmatpush1.msra.mxu0 0.0
    %555 = vmatprep.subr.mxu0 0.0
    %556 = vmatpush1.msra.mxu0 0.0
    %557 = vmatprep.subr.mxu0 0.0
    %558 = vmatpush1.msra.mxu0 0.0
    %559 = vmatprep.subr.mxu0 0.0
    %560 = vmatpush1.msra.mxu0 0.0
    %561 = vmatprep.subr.mxu0 0.0
    %562 = vmatpush1.msra.mxu0 0.0
    %563 = vmatprep.subr.mxu0 0.0
    %564 = vmatpush1.msra.mxu0 0.0
    %565 = vmatprep.subr.mxu0 0.0
    %566 = vmatpush1.msra.mxu0 0.0
    %567 = vmatprep.subr.mxu0 0.0
    %568 = vmatpush1.msra.mxu0 0.0
    %569 = vmatprep.subr.mxu0 0.0
    %570 = vmatpush1.msra.mxu0 0.0
    %571 = vmatprep.subr.mxu0 0.0
    %572 = vmatpush1.msra.mxu0 0.0
    %573 = vmatprep.subr.mxu0 0.0
    %574 = vmatpush1.msra.mxu0 0.0
    %575 = vmatprep.subr.mxu0 0.0
    %576 = vmatpush1.msra.mxu0 0.0
    %577 = vmatprep.subr.mxu0 0.0
    %578 = vmatpush1.msra.mxu0 0.0
    %579 = vmatprep.subr.mxu0 0.0
    %580 = vmatpush1.msra.mxu0 0.0
    %581 = vmatprep.subr.mxu0 0.0
    %582 = vmatpush1.msra.mxu0 0.0
    %583 = vmatprep.subr.mxu0 0.0
    %584 = vmatpush1.msra.mxu0 0.0
    %585 = vmatprep.subr.mxu0 0.0
    %586 = vmatpush1.msra.mxu0 0.0
    %587 = vmatprep.subr.mxu0 0.0
    %588 = vmatpush1.msra.mxu0 0.0
    %589 = vmatprep.subr.mxu0 0.0
    %590 = vmatpush1.msra.mxu0 0.0
    %591 = vmatprep.subr.mxu0 0.0
    %592 = vmatpush1.msra.mxu0 0.0
    %593 = vmatprep.subr.mxu0 0.0
    %594 = vmatpush1.msra.mxu0 0.0
    %595 = vmatprep.subr.mxu0 0.0
    %596 = vmatpush1.msra.mxu0 0.0
    %597 = vmatprep.mubr.f32.mxu0 0.0
    %598 = vmatmul.mubr.f32.gmra.mrb[0].mxu0 %v531
    %v599 = vpop.f32.mrb[0].mxu0
    %v600 = vadd.f32 %v527, %v599
    %v601 = vpop.f32.mrb[0].mxu0
    %602 = vdwg.mxu0
    %v603 = vld [vmem:[%s12] sm:$0x1]
    %v605 = vlaneseq
    %v606 = vshrl.u32 %v605, 7
    %v607 = vsub.s32 0, %v606
    %v608 = vrot.slane %v603, %v607
    %v610 = vadd.f32 %v600, %v608
    %v611 = vmax.f32 %v610, 0.0
    %v612 = vld [vmem:[%s13] sm:$0xff]
    %v613 = vld [vmem:[%s13 + $0x8] sm:$0xff]
    %v614 = vld [vmem:[%s13 + $0x10] sm:$0xff]
    %v615 = vld [vmem:[%s13 + $0x18] sm:$0xff]
    %v616 = vld [vmem:[%s4] sm:$0xff]
    %v617 = vlaneseq
    %v618 = vand.u32 %v617, 127
    %619 = vset.pattern.permute.xlu0 0
    %620 = vperm.xlu0 %619, %v616
    %v621 = vpop.permute.xlu0 %620
    %vm622 = vcmp.eq.s32.totalorder %v621, %v618
    %v623 = vsel %vm622, 1, 0
    %v624 = vcvt.s32.f32 %v623
    %v625 = vld [vmem:[%s14] sm:$0xff]
    %v626 = vld [vmem:[%s14 + $0x8] sm:$0xff]
    %v627 = vld [vmem:[%s14 + $0x10] sm:$0xff]
    %v628 = vld [vmem:[%s14 + $0x18] sm:$0xff]
    %v629 = vld [vmem:[%s14 + $0x20] sm:$0xff]
    %v630 = vld [vmem:[%s14 + $0x28] sm:$0xff]
    %v631 = vld [vmem:[%s14 + $0x30] sm:$0xff]
    %v632 = vld [vmem:[%s14 + $0x38] sm:$0xff]
    %v633 = vld [vmem:[%s14 + $0x40] sm:$0x1]
    %vm634 = vcmask 531456
    %v636 = vsel %vm634, %v624, 0
    %vm638 = vcmask 1040384
    %v640 = vsel %vm638, %v633, 0
    %642 = vmatprep.subr.mxu0 0.0
    %643 = vmatpush1.msra.mxu0 %v625
    %644 = vmatprep.subr.mxu0 0.0
    %645 = vmatpush1.msra.mxu0 %v626
    %646 = vmatprep.subr.mxu0 0.0
    %647 = vmatpush1.msra.mxu0 %v627
    %648 = vmatprep.subr.mxu0 0.0
    %649 = vmatpush1.msra.mxu0 %v628
    %650 = vmatprep.subr.mxu0 0.0
    %651 = vmatpush1.msra.mxu0 %v629
    %652 = vmatprep.subr.mxu0 0.0
    %653 = vmatpush1.msra.mxu0 %v630
    %654 = vmatprep.subr.mxu0 0.0
    %655 = vmatpush1.msra.mxu0 %v631
    %656 = vmatprep.subr.mxu0 0.0
    %657 = vmatpush1.msra.mxu0 %v632
    %658 = vmatprep.subr.mxu0 0.0
    %659 = vmatpush1.msra.mxu0 %v640
    %660 = vmatprep.subr.mxu0 0.0
    %661 = vmatpush1.msra.mxu0 0.0
    %662 = vmatprep.subr.mxu0 0.0
    %663 = vmatpush1.msra.mxu0 0.0
    %664 = vmatprep.subr.mxu0 0.0
    %665 = vmatpush1.msra.mxu0 0.0
    %666 = vmatprep.subr.mxu0 0.0
    %667 = vmatpush1.msra.mxu0 0.0
    %668 = vmatprep.subr.mxu0 0.0
    %669 = vmatpush1.msra.mxu0 0.0
    %670 = vmatprep.subr.mxu0 0.0
    %671 = vmatpush1.msra.mxu0 0.0
    %672 = vmatprep.subr.mxu0 0.0
    %673 = vmatpush1.msra.mxu0 0.0
    %674 = vmatprep.subr.mxu0 0.0
    %675 = vmatpush1.msra.mxu0 0.0
    %676 = vmatprep.subr.mxu0 0.0
    %677 = vmatpush1.msra.mxu0 0.0
    %678 = vmatprep.subr.mxu0 0.0
    %679 = vmatpush1.msra.mxu0 0.0
    %680 = vmatprep.subr.mxu0 0.0
    %681 = vmatpush1.msra.mxu0 0.0
    %682 = vmatprep.subr.mxu0 0.0
    %683 = vmatpush1.msra.mxu0 0.0
    %684 = vmatprep.subr.mxu0 0.0
    %685 = vmatpush1.msra.mxu0 0.0
    %686 = vmatprep.subr.mxu0 0.0
    %687 = vmatpush1.msra.mxu0 0.0
    %688 = vmatprep.subr.mxu0 0.0
    %689 = vmatpush1.msra.mxu0 0.0
    %690 = vmatprep.subr.mxu0 0.0
    %691 = vmatpush1.msra.mxu0 0.0
    %692 = vmatprep.subr.mxu0 0.0
    %693 = vmatpush1.msra.mxu0 0.0
    %694 = vmatprep.subr.mxu0 0.0
    %695 = vmatpush1.msra.mxu0 0.0
    %696 = vmatprep.subr.mxu0 0.0
    %697 = vmatpush1.msra.mxu0 0.0
    %698 = vmatprep.subr.mxu0 0.0
    %699 = vmatpush1.msra.mxu0 0.0
    %700 = vmatprep.subr.mxu0 0.0
    %701 = vmatpush1.msra.mxu0 0.0
    %702 = vmatprep.subr.mxu0 0.0
    %703 = vmatpush1.msra.mxu0 0.0
    %704 = vmatprep.subr.mxu0 0.0
    %705 = vmatpush1.msra.mxu0 0.0
    %706 = vmatprep.mubr.f32.mxu0 0.0
    %707 = vmatmul.mubr.f32.gmra.mrb[0].mxu0 %v636
    %v708 = vpop.f32.mrb[0].mxu0
    %v709 = vadd.f32 0.0, %v708
    %v710 = vpop.f32.mrb[0].mxu0
    %711 = vdwg.mxu0
    %v713 = vsel %vm67, %v611, 0
    %715 = vmatprep.subr.mxu0 0.0
    %716 = vmatpush1.msra.mxu0 %v612
    %717 = vmatprep.subr.mxu0 0.0
    %718 = vmatpush1.msra.mxu0 %v613
    %719 = vmatprep.subr.mxu0 0.0
    %720 = vmatpush1.msra.mxu0 %v614
    %721 = vmatprep.subr.mxu0 0.0
    %722 = vmatpush1.msra.mxu0 %v615
    %723 = vmatprep.subr.mxu0 0.0
    %724 = vmatpush1.msra.mxu0 0.0
    %725 = vmatprep.subr.mxu0 0.0
    %726 = vmatpush1.msra.mxu0 0.0
    %727 = vmatprep.subr.mxu0 0.0
    %728 = vmatpush1.msra.mxu0 0.0
    %729 = vmatprep.subr.mxu0 0.0
    %730 = vmatpush1.msra.mxu0 0.0
    %731 = vmatprep.subr.mxu0 0.0
    %732 = vmatpush1.msra.mxu0 0.0
    %733 = vmatprep.subr.mxu0 0.0
    %734 = vmatpush1.msra.mxu0 0.0
    %735 = vmatprep.subr.mxu0 0.0
    %736 = vmatpush1.msra.mxu0 0.0
    %737 = vmatprep.subr.mxu0 0.0
    %738 = vmatpush1.msra.mxu0 0.0
    %739 = vmatprep.subr.mxu0 0.0
    %740 = vmatpush1.msra.mxu0 0.0
    %741 = vmatprep.subr.mxu0 0.0
    %742 = vmatpush1.msra.mxu0 0.0
    %743 = vmatprep.subr.mxu0 0.0
    %744 = vmatpush1.msra.mxu0 0.0
    %745 = vmatprep.subr.mxu0 0.0
    %746 = vmatpush1.msra.mxu0 0.0
    %747 = vmatprep.subr.mxu0 0.0
    %748 = vmatpush1.msra.mxu0 0.0
    %749 = vmatprep.subr.mxu0 0.0
    %750 = vmatpush1.msra.mxu0 0.0
    %751 = vmatprep.subr.mxu0 0.0
    %752 = vmatpush1.msra.mxu0 0.0
    %753 = vmatprep.subr.mxu0 0.0
    %754 = vmatpush1.msra.mxu0 0.0
    %755 = vmatprep.subr.mxu0 0.0
    %756 = vmatpush1.msra.mxu0 0.0
    %757 = vmatprep.subr.mxu0 0.0
    %758 = vmatpush1.msra.mxu0 0.0
    %759 = vmatprep.subr.mxu0 0.0
    %760 = vmatpush1.msra.mxu0 0.0
    %761 = vmatprep.subr.mxu0 0.0
    %762 = vmatpush1.msra.mxu0 0.0
    %763 = vmatprep.subr.mxu0 0.0
    %764 = vmatpush1.msra.mxu0 0.0
    %765 = vmatprep.subr.mxu0 0.0
    %766 = vmatpush1.msra.mxu0 0.0
    %767 = vmatprep.subr.mxu0 0.0
    %768 = vmatpush1.msra.mxu0 0.0
    %769 = vmatprep.subr.mxu0 0.0
    %770 = vmatpush1.msra.mxu0 0.0
    %771 = vmatprep.subr.mxu0 0.0
    %772 = vmatpush1.msra.mxu0 0.0
    %773 = vmatprep.subr.mxu0 0.0
    %774 = vmatpush1.msra.mxu0 0.0
    %775 = vmatprep.subr.mxu0 0.0
    %776 = vmatpush1.msra.mxu0 0.0
    %777 = vmatprep.subr.mxu0 0.0
    %778 = vmatpush1.msra.mxu0 0.0
    %779 = vmatprep.mubr.f32.mxu0 0.0
    %780 = vmatmul.mubr.f32.gmra.mrb[0].mxu0 %v713
    %v781 = vpop.f32.mrb[0].mxu0
    %v782 = vadd.f32 %v709, %v781
    %v783 = vpop.f32.mrb[0].mxu0
    %784 = vdwg.mxu0
    %786 = vrot.lane.b32.xlu0 %v360, 8
    %v787 = vpop.permute.xlu0 %786
    %790 = vrot.lane.b32.xlu0 %v782, 16
    %v791 = vpop.permute.xlu0 %790
    %vm793 = vcmask 64512
    %v794 = vsel %vm793, %v212, %v787
    %v795 = vsel %vm456, %v794, %v791
    %v796 = vsel %vm67, %v795, 0.0
    %797 = vst [vmem:[#allocation2] sm:$0xff] %v796
    // Predicated region
    $region62: #{tpu_custom_call.1} parent=1 // pred_check
      _
    $region63: #{tpu_custom_call.1} parent=1 // pred_check_branch
      %799 = sbr.rel (0) target = $region65
    $region64: #{tpu_custom_call.1} parent=1 // pred_region
      %s801 = ssub.s32 128, 128
      %802 = vsyncadd [#allocation3], %s801
      %s804 = sshll.u32 [#allocation2], 4
      %s805 = int_to_ptr.vmem [resolvable:$true] %s804
      %807 = dma.vmem_to_hbm [thread:$0]  %s805, 128, %s15, [#allocation3]
    $region65: #{tpu_custom_call.1} parent=1 // pred_fallthru
      _
    // Predicated region
    $region66: #{tpu_custom_call.1} parent=1 // pred_check
      _
    $region67: #{tpu_custom_call.1} parent=1 // pred_check_branch
      %809 = sbr.rel (0) target = $region69
    $region68: #{tpu_custom_call.1} parent=1 // pred_region
      %810 = dma.done [#allocation3], 128
    $region69: #{tpu_custom_call.1} parent=1 // pred_fallthru
      _
    %811 = vsyncpa [#allocation3], 1

</llo_original>
